<compile_context>
chip_gen: v7x
topology: tpu7x:2x2x1
jax: 0.10.0
libtpu: 0.0.40
codegen_flags: <defaults>
</compile_context>

<pallas_src>
import functools

import jax
import jax.numpy as jnp
from jax.experimental import pallas as pl
from jax.experimental.pallas import tpu as pltpu

Q1 = 0.1
Q9 = 1.0 - Q1


def _pinball_kernel(packed_ref, loss_ref, *, rows, inv_n):
    # packed_ref: (3*rows, 128) f32 in VMEM; row-blocks = [output, target, var],
    # zero-padded.  `rows` is a multiple of 8, so slices stay tile-aligned.
    o = packed_ref[0:rows, :]
    t = packed_ref[rows:2 * rows, :]
    v = packed_ref[2 * rows:3 * rows, :]

    e = t - o                                 # q_10 = e + v ; q_90 = e - v
    # (loss_10 + loss_90) per element = 0.5 * (|q_10| + |q_90| - 1.6 * v)
    per = jnp.abs(e + v) + jnp.abs(e - v) - 1.6 * v

    # mean(loss_10) + mean(loss_90) = sum(per) * 0.5 / N   (N = true count)
    loss_ref[0] = (0.5 * inv_n) * jnp.sum(per)


def pinball_loss(output_o, target_o, var_o):
    """Pallas TPU implementation of PinBallLoss.forward. Returns a scalar."""
    assert output_o.shape == target_o.shape == var_o.shape

    n = output_o.size                          # true element count (static)
    padded = ((n + 1023) // 1024) * 1024       # pad to a full (8,128) tile
    rows = padded // 128

    def prep(x):
        x = jnp.ravel(x).astype(jnp.float32)
        if padded != n:
            x = jnp.pad(x, (0, padded - n))    # zeros contribute 0 to the sum
        return x.reshape(rows, 128)

    packed = jnp.concatenate(
        [prep(output_o), prep(target_o), prep(var_o)], axis=0)   # (3*rows, 128)

    kernel = functools.partial(_pinball_kernel, rows=rows, inv_n=1.0 / float(n))
    res = pl.pallas_call(
        kernel,
        out_shape=jax.ShapeDtypeStruct((1,), jnp.float32),
        in_specs=[pl.BlockSpec(memory_space=pltpu.MemorySpace.VMEM)],
        out_specs=pl.BlockSpec(memory_space=pltpu.MemorySpace.SMEM),
    )(packed)
    return res[0]


def pinball_loss_ref(output_o, target_o, var_o):
    """Plain-JAX reference matching the PyTorch forward."""
    q_10 = target_o - (output_o - var_o)
    q_90 = target_o - (output_o + var_o)
    loss_10 = jnp.maximum(Q1 * q_10, (Q1 - 1.0) * q_10)
    loss_90 = jnp.maximum(Q9 * q_90, (Q9 - 1.0) * q_90)
    return jnp.mean(loss_10) + jnp.mean(loss_90)


if __name__ == "__main__":
    key = jax.random.PRNGKey(0)
    k1, k2, k3 = jax.random.split(key, 3)

    B, D = 16, 2  # batch of gaze predictions, (pitch, yaw)
    output_o = jax.random.normal(k1, (B, D), dtype=jnp.float32)
    target_o = jax.random.normal(k2, (B, D), dtype=jnp.float32)
    # variance / uncertainty term, keep it positive like a predicted std-dev
    var_o = jnp.abs(jax.random.normal(k3, (B, D), dtype=jnp.float32)) * 0.5

    loss = jax.block_until_ready(pinball_loss(output_o, target_o, var_o))
    ref = jax.block_until_ready(pinball_loss_ref(output_o, target_o, var_o))

    assert jnp.allclose(loss, ref, rtol=1e-5, atol=1e-6), (loss, ref)
    print("KERNEL_OK")
</pallas_src>

<mosaic_0001>
module attributes {stable_mosaic.version = 11 : i64} {
  func.func @_pinball_kernel(%arg0: memref<24x128xf32, #tpu.memory_space<vmem>>, %arg1: memref<1xf32, #tpu.memory_space<smem>>) attributes {dimension_semantics = [], scalar_prefetch = 0 : i64, scratch_operands = 0 : i64, tpu.core_type = #tpu.core_type<tc>} {
    %c0 = arith.constant 0 : index
    %c0_0 = arith.constant 0 : index
    %0 = vector.load %arg0[%c0, %c0_0] : memref<24x128xf32, #tpu.memory_space<vmem>>, vector<8x128xf32>
    %c8 = arith.constant 8 : index
    %c0_1 = arith.constant 0 : index
    %1 = vector.load %arg0[%c8, %c0_1] : memref<24x128xf32, #tpu.memory_space<vmem>>, vector<8x128xf32>
    %c16 = arith.constant 16 : index
    %c0_2 = arith.constant 0 : index
    %2 = vector.load %arg0[%c16, %c0_2] : memref<24x128xf32, #tpu.memory_space<vmem>>, vector<8x128xf32>
    %3 = arith.subf %1, %0 : vector<8x128xf32>
    %4 = arith.addf %3, %2 : vector<8x128xf32>
    %5 = math.absf %4 : vector<8x128xf32>
    %6 = arith.subf %3, %2 : vector<8x128xf32>
    %7 = math.absf %6 : vector<8x128xf32>
    %8 = arith.addf %5, %7 : vector<8x128xf32>
    %cst = arith.constant 1.600000e+00 : f32
    %9 = vector.broadcast %cst : f32 to vector<8x128xf32>
    %10 = arith.mulf %9, %2 : vector<8x128xf32>
    %11 = arith.subf %8, %10 : vector<8x128xf32>
    %12 = vector.shape_cast %11 : vector<8x128xf32> to vector<1x8x128xf32>
    %cst_3 = arith.constant dense<0.000000e+00> : vector<1xf32>
    %13 = vector.multi_reduction <add>, %12, %cst_3 [1, 2] : vector<1x8x128xf32> to vector<1xf32>
    %14 = vector.shape_cast %13 : vector<1xf32> to vector<1x1x1xf32>
    %15 = vector.extract %14[0, 0, 0] : f32 from vector<1x1x1xf32>
    %cst_4 = arith.constant 1.562500e-02 : f32
    %16 = arith.mulf %cst_4, %15 : f32
    %c0_5 = arith.constant 0 : index
    %17 = memref.load %arg1[%c0_5] : memref<1xf32, #tpu.memory_space<smem>>
    memref.store %16, %arg1[%c0_5] : memref<1xf32, #tpu.memory_space<smem>>
    return
  }
}

</mosaic_0001>

<llo_original>
// kernel: tpu_custom_call.1
$region0: #{tpu_custom_call.1}
  #allocation0 [shape = 'u32[]', space=smem, size = 0x4, offset = 0x4, fixed_abs, tag = 'smem constant byte address 0x4 - core index']
  #allocation1 [shape = 'u32[144,128]{1,0:T(1,128)}', space=vmem, size = 0x12000, scoped, tag = 'internal scratch']
  %s0 = inlined_call_operand.hbm [shape: f32[24,128], index: 0, kind: input, shape index: {}]
  %s1 = inlined_call_operand.hbm [shape: f32[1], index: 1, kind: output, shape index: {}]
  %s2 = sld [smem:[#allocation0]]
  $region18: #{tpu_custom_call.1} parent=0
    _
  %s4 = ssub.s32 1, %s2
  %s5 = scalar_select 0, %s4, %s2
  $region1: #{tpu_custom_call.1} parent=0
    #allocation2 [shape = 'u8[12288]{0}', space=vmem, size = 0x3000, scoped, tag = 'input window, operand 0, single buffered']
    #allocation3 [shape = 's32[1]{0}', space=sflag, size = 0x4, scoped, tag = 'scoped memory for tpu_custom_call.1']
    #allocation4 [shape = 's32[1]{0}', space=sflag, size = 0x4, scoped, tag = 'scoped memory for tpu_custom_call.1']
    #allocation5 [shape = 'u8[512]{0}', space=smem, size = 0x200, scoped, tag = 'output window, operand 0, single buffered']
    %6 = vsyncpa [#allocation3], 0
    %7 = vsyncpa [#allocation4], 0
    // Predicated region
    $region2: #{tpu_custom_call.1} parent=1 // pred_check
      _
    $region3: #{tpu_custom_call.1} parent=1 // pred_check_branch
      %9 = sbr.rel (0) target = $region5
    $region4: #{tpu_custom_call.1} parent=1 // pred_region
      %s11 = ssub.s32 384, 384
      %12 = vsyncadd [#allocation3], %s11
      %s13 = sshll.u32 [#allocation2], 4
      %s14 = int_to_ptr.vmem [resolvable:$true] %s13
      %19 = dma.hbm_to_vmem [thread:$0]  %s0, 384, %s14, [#allocation3], 128, 128, 8
    $region5: #{tpu_custom_call.1} parent=1 // pred_fallthru
      _
    // Predicated region
    $region6: #{tpu_custom_call.1} parent=1 // pred_check
      _
    $region7: #{tpu_custom_call.1} parent=1 // pred_check_branch
      %21 = sbr.rel (0) target = $region9
    $region8: #{tpu_custom_call.1} parent=1 // pred_region
      %22 = dma.done [#allocation3], 384
    $region9: #{tpu_custom_call.1} parent=1 // pred_fallthru
      _
    %v23 = vld [vmem:[#allocation2] sm:$0xff]
    %v24 = vld [vmem:[#allocation2 + $0x8] sm:$0xff]
    %v25 = vld [vmem:[#allocation2 + $0x10] sm:$0xff]
    %v26 = vsub.f32 %v24, %v23
    %v27 = vadd.f32 %v26, %v25
    %v28 = vand.u32 2147483647, %v27
    %v29 = vsub.f32 %v26, %v25
    %v30 = vand.u32 2147483647, %v29
    %v31 = vadd.f32 %v28, %v30
    %v32 = vmul.f32 %v25, 1.6
    %v33 = vsub.f32 %v31, %v32
    %34 = vadd.xlane.f32.xlu0 %v33
    %v35 = vpop.xlane.xlu0 %34
    %v36 = vrot.slane %v35, 4
    %v37 = vadd.f32 %v35, %v36
    %v38 = vrot.slane %v37, 2
    %v39 = vadd.f32 %v37, %v38
    %v40 = vrot.slane %v39, 1
    %v41 = vadd.f32 %v39, %v40
    %s42 = vtos %v41
    %s43 = smul.f32 %s42, 0.015625
    %s44 = scalar_lea.smem [#allocation5], 0
    %45 = sst [smem:[%s44]] %s43
    // Predicated region
    $region10: #{tpu_custom_call.1} parent=1 // pred_check
      _
    $region11: #{tpu_custom_call.1} parent=1 // pred_check_branch
      %47 = sbr.rel (0) target = $region13
    $region12: #{tpu_custom_call.1} parent=1 // pred_region
      %s49 = ssub.s32 16, 16
      %50 = vsyncadd [#allocation4], %s49
      %53 = dma.smem_to_hbm [#allocation5], 16, %s1, [#allocation4]
    $region13: #{tpu_custom_call.1} parent=1 // pred_fallthru
      _
    // Predicated region
    $region14: #{tpu_custom_call.1} parent=1 // pred_check
      _
    $region15: #{tpu_custom_call.1} parent=1 // pred_check_branch
      %55 = sbr.rel (0) target = $region17
    $region16: #{tpu_custom_call.1} parent=1 // pred_region
      %56 = dma.done [#allocation4], 16
    $region17: #{tpu_custom_call.1} parent=1 // pred_fallthru
      _
    %57 = sfence
    %58 = vsyncpa [#allocation3], 1
    %59 = vsyncpa [#allocation4], 1

</llo_original>
